<compile_context>
chip_gen: v7x
topology: tpu7x:2x2x1
jax: 0.10.0
libtpu: 0.0.40
codegen_flags: <defaults>
</compile_context>

<pallas_src>
import functools

import jax
import jax.numpy as jnp
from jax.experimental import pallas as pl
from jax.experimental.pallas import tpu as pltpu


# ----------------------------- Pallas kernels ------------------------------ #

def _conv_stats_kernel(w_ref, b_ref, p_ref, y_ref, sum_ref, sq_ref):
    """One (batch, spatial-tile) step: im2col conv matmul + partial BN stats.

    w_ref:   (Cout, 27*Cin)    weights (matmul LHS), compute dtype
    b_ref:   (Cout, 1)         bias, f32
    p_ref:   (1, 27*Cin, tS)   im2col patches, spatial in the lane dim, compute dtype
    y_ref:   (1, Cout, tS)     conv output (+bias), channel-major, compute dtype
    sum_ref: (1, 1, Cout, 1)   per-channel partial sum of the PRE-bias conv output
    sq_ref:  (1, 1, Cout, 1)   per-channel partial sum of squares (pre-bias)
    """
    acc = jnp.dot(w_ref[...], p_ref[0], preferred_element_type=jnp.float32)  # (Cout, tS)
    # Pre-bias partial stats: zero-padded lanes contribute exactly 0 (no masking), and
    # the bias shift is added back in the tiny XLA glue (avoids E[x^2]-mean^2 cancel).
    sum_ref[0, 0] = jnp.sum(acc, axis=1, keepdims=True)
    sq_ref[0, 0] = jnp.sum(acc * acc, axis=1, keepdims=True)
    y_ref[0] = (acc + b_ref[...]).astype(y_ref.dtype)


def _bn_silu_kernel(y_ref, scale_ref, shift_ref, o_ref, *, approx_sigmoid):
    """Affine BatchNorm (precomputed scale/shift) + SiLU on lane-dense f32 tiles.

    y_ref: (1, Cout, tS) compute dtype; scale/shift: (Cout, 1) f32; o_ref: (1, Cout, tS) f32.
    """
    z = y_ref[0].astype(jnp.float32) * scale_ref[...] + shift_ref[...]
    # exp + reciprocal ride the EUP slot; approx=True on the bf16 fast path is free VALU
    # slack in this mem-bound elementwise kernel, exact on the f32 parity path.
    sig = pl.reciprocal(1.0 + jnp.exp(-z), approx=approx_sigmoid)
    o_ref[0] = (z * sig).astype(o_ref.dtype)


# ------------------------------- wrapper ----------------------------------- #

def _round_up(x, m):
    return -(-x // m) * m


def _vmem_limit_bytes():
    """Generation-aware scoped-VMEM limit (v7x has 64 MiB total vs 128 on v5e/v6e)."""
    try:
        cap = pltpu.get_tpu_info().vmem_capacity_bytes
    except Exception:
        cap = 64 * 1024 * 1024          # conservative fallback (v7x per-core VMEM)
    return min(cap // 2, 64 * 1024 * 1024)


def _pick_spatial_tile(S, K, in_bytes, cout, y_bytes, budget_bytes):
    """Spatial tile (multiple of 128) from VMEM budget, vreg pressure, 2048-lane cap."""
    s128 = _round_up(S, 128)
    # Per-lane VMEM per grid step: double-buffered patches block + y block (+ f32 out).
    per_lane = 2 * (K * in_bytes + cout * y_bytes + cout * 4)
    vmem_cap = max(128, (budget_bytes // max(per_lane, 1)) // 128 * 128)
    # acc and acc*acc live as f32 values (~2*Cout*tS/1024 vregs): stay well under 64.
    vreg_cap = max(128, ((24 * 1024) // max(cout, 1)) // 128 * 128)
    return min(2048, vmem_cap, vreg_cap, s128)


def basic_block_forward(x, w, b, gamma, beta, padding=(1, 1, 1), eps=1e-5,
                        compute_dtype=jnp.bfloat16):
    """x: (N, Cin, D, H, W); w: (Cout, Cin, 3, 3, 3) (PyTorch layouts). Returns NCDHW f32."""
    N, Cin, D, H, W = x.shape
    Cout = w.shape[0]
    pd, ph, pw = padding
    S = D * H * W
    K = 27 * Cin

    # Circular padding + im2col as XLA glue; the Pallas kernel is one clean matmul.
    x_pad = jnp.pad(x, ((0, 0), (0, 0), (pd, pd), (ph, ph), (pw, pw)), mode="wrap")
    taps = []
    for kd in range(3):
        for kh in range(3):
            for kw in range(3):
                taps.append(jax.lax.slice(
                    x_pad, (0, 0, kd, kh, kw), (N, Cin, kd + D, kh + H, kw + W)))
    patches = jnp.stack(taps, axis=1).reshape(N, K, S).astype(compute_dtype)

    w_lhs = jnp.transpose(w, (0, 2, 3, 4, 1)).reshape(Cout, K).astype(compute_dtype)
    b2 = b.reshape(Cout, 1).astype(jnp.float32)

    in_bytes = jnp.dtype(compute_dtype).itemsize
    vmem_limit = _vmem_limit_bytes()
    tS = _pick_spatial_tile(S, K, in_bytes, Cout, in_bytes, vmem_limit // 2)
    n_s = -(-S // tS)
    S_pad = n_s * tS
    if S_pad != S:
        # Zero-pad: padded patch columns yield acc == 0 -> no contribution to the
        # pre-bias stats; their y values are garbage and sliced off at the end.
        patches = jnp.pad(patches, ((0, 0), (0, 0), (0, S_pad - S)))

    y, ch_sum, ch_sq = pl.pallas_call(
        _conv_stats_kernel,
        out_shape=(
            jax.ShapeDtypeStruct((N, Cout, S_pad), compute_dtype),
            jax.ShapeDtypeStruct((N, n_s, Cout, 1), jnp.float32),
            jax.ShapeDtypeStruct((N, n_s, Cout, 1), jnp.float32),
        ),
        grid_spec=pltpu.PrefetchScalarGridSpec(
            num_scalar_prefetch=0,
            grid=(N, n_s),
            in_specs=[
                pl.BlockSpec((Cout, K), lambda n, s: (0, 0)),
                pl.BlockSpec((Cout, 1), lambda n, s: (0, 0)),
                pl.BlockSpec((1, K, tS), lambda n, s: (n, 0, s)),
            ],
            out_specs=(
                pl.BlockSpec((1, Cout, tS), lambda n, s: (n, 0, s)),
                pl.BlockSpec((1, 1, Cout, 1), lambda n, s: (n, s, 0, 0)),
                pl.BlockSpec((1, 1, Cout, 1), lambda n, s: (n, s, 0, 0)),
            ),
        ),
        compiler_params=pltpu.CompilerParams(
            dimension_semantics=("parallel", "parallel"),
            vmem_limit_bytes=vmem_limit),
    )(w_lhs, b2, patches)

    # Finalize batch statistics from the per-tile partials (tiny (Cout,)-sized glue).
    count = float(N * S)
    sum_pre = jnp.sum(ch_sum[..., 0], axis=(0, 1))                    # (Cout,)
    sq_pre = jnp.sum(ch_sq[..., 0], axis=(0, 1))
    mean_pre = sum_pre / count
    var = jnp.maximum(sq_pre / count - mean_pre * mean_pre, 0.0)      # biased var (BN fwd)
    mean = mean_pre + b                                               # add back bias shift
    scale = gamma * jax.lax.rsqrt(var + eps)
    shift = beta - mean * scale

    bn_kernel = functools.partial(
        _bn_silu_kernel,
        approx_sigmoid=(jnp.dtype(compute_dtype) != jnp.dtype(jnp.float32)))
    out = pl.pallas_call(
        bn_kernel,
        out_shape=jax.ShapeDtypeStruct((N, Cout, S_pad), jnp.float32),
        grid_spec=pltpu.PrefetchScalarGridSpec(
            num_scalar_prefetch=0,
            grid=(N, n_s),
            in_specs=[
                pl.BlockSpec((1, Cout, tS), lambda n, s: (n, 0, s)),
                pl.BlockSpec((Cout, 1), lambda n, s: (0, 0)),
                pl.BlockSpec((Cout, 1), lambda n, s: (0, 0)),
            ],
            out_specs=pl.BlockSpec((1, Cout, tS), lambda n, s: (n, 0, s)),
        ),
        compiler_params=pltpu.CompilerParams(
            dimension_semantics=("parallel", "parallel"),
            vmem_limit_bytes=vmem_limit),
    )(y, scale.reshape(Cout, 1).astype(jnp.float32),
      shift.reshape(Cout, 1).astype(jnp.float32))

    if S_pad != S:
        out = out[:, :, :S]
    # Output is already channel-major: plain reshape, no transpose.
    return out.reshape(N, Cout, D, H, W)


# ------------------------------ reference ---------------------------------- #

def reference_forward(x, w, b, gamma, beta, padding=(1, 1, 1), eps=1e-5):
    pd, ph, pw = padding
    x_pad = jnp.pad(x, ((0, 0), (0, 0), (pd, pd), (ph, ph), (pw, pw)), mode="wrap")
    y = jax.lax.conv_general_dilated(
        x_pad, w, window_strides=(1, 1, 1), padding="VALID",
        dimension_numbers=("NCDHW", "OIDHW", "NCDHW"))
    y = y + b.reshape(1, -1, 1, 1, 1)
    mean = jnp.mean(y, axis=(0, 2, 3, 4), keepdims=True)
    var = jnp.mean((y - mean) ** 2, axis=(0, 2, 3, 4), keepdims=True)
    z = (y - mean) * jax.lax.rsqrt(var + eps) * gamma.reshape(1, -1, 1, 1, 1) \
        + beta.reshape(1, -1, 1, 1, 1)
    return z * jax.nn.sigmoid(z)


# --------------------------------- main ------------------------------------ #

if __name__ == "__main__":
    N, Cin, Cout, D, H, W = 2, 4, 8, 8, 8, 8
    key = jax.random.PRNGKey(0)
    k1, k2, k3, k4, k5 = jax.random.split(key, 5)

    x = jax.random.normal(k1, (N, Cin, D, H, W), jnp.float32)

    fan_in = Cin * 3 * 3 * 3
    bound = float(1.0 / (fan_in ** 0.5))
    w = jax.random.uniform(k2, (Cout, Cin, 3, 3, 3), jnp.float32, -bound, bound)
    b = jax.random.uniform(k3, (Cout,), jnp.float32, -bound, bound)
    gamma = 1.0 + 0.1 * jax.random.normal(k4, (Cout,), jnp.float32)
    beta = 0.1 * jax.random.normal(k5, (Cout,), jnp.float32)

    ref = reference_forward(x, w, b, gamma, beta)

    # f32 parity path: f32 MXU operands, exact reciprocal.
    fwd_f32 = jax.jit(functools.partial(basic_block_forward, compute_dtype=jnp.float32))
    out_f32 = jax.block_until_ready(fwd_f32(x, w, b, gamma, beta))
    assert out_f32.shape == (N, Cout, D, H, W), out_f32.shape
    err_f32 = float(jnp.max(jnp.abs(out_f32 - ref)))
    assert err_f32 < 1e-3, f"f32 path max abs err {err_f32}"

    # Default bf16 fast path: bf16 MXU operands + bf16 inter-pass y, f32 BN/SiLU tail.
    fwd_bf16 = jax.jit(basic_block_forward)
    out_bf16 = jax.block_until_ready(fwd_bf16(x, w, b, gamma, beta))
    assert out_bf16.shape == (N, Cout, D, H, W), out_bf16.shape
    err_bf16 = float(jnp.max(jnp.abs(out_bf16 - ref)))
    assert err_bf16 < 1e-1, f"bf16 path max abs err {err_bf16}"

    print("KERNEL_OK")
</pallas_src>

<mosaic_0001>
module attributes {stable_mosaic.version = 11 : i64} {
  func.func @_conv_stats_kernel(%arg0: i32, %arg1: i32, %arg2: memref<8x108xf32, #tpu.memory_space<vmem>>, %arg3: memref<8x1xf32, #tpu.memory_space<vmem>>, %arg4: memref<1x108x512xf32, #tpu.memory_space<vmem>>, %arg5: memref<1x8x512xf32, #tpu.memory_space<vmem>>, %arg6: memref<1x1x8x1xf32, #tpu.memory_space<vmem>>, %arg7: memref<1x1x8x1xf32, #tpu.memory_space<vmem>>) attributes {dimension_semantics = [#tpu.dimension_semantics<parallel>, #tpu.dimension_semantics<parallel>], iteration_bounds = array<i64: 2, 1>, scalar_prefetch = 0 : i64, scratch_operands = 0 : i64, tpu.core_type = #tpu.core_type<tc>, window_params = [{pipeline_mode = #tpu.pipeline_mode<synchronous>, transform_indices = @transform_0, window_bounds = array<i64: 8, 108>}, {pipeline_mode = #tpu.pipeline_mode<synchronous>, transform_indices = @transform_1, window_bounds = array<i64: 8, 1>}, {transform_indices = @transform_2, window_bounds = array<i64: 1, 108, 512>}, {transform_indices = @transform_3, window_bounds = array<i64: 1, 8, 512>}, {transform_indices = @transform_4, window_bounds = array<i64: 1, 1, 8, 1>}, {transform_indices = @transform_5, window_bounds = array<i64: 1, 1, 8, 1>}]} {
    %c0 = arith.constant 0 : index
    %c0_0 = arith.constant 0 : index
    %0 = vector.load %arg2[%c0, %c0_0] : memref<8x108xf32, #tpu.memory_space<vmem>>, vector<8x108xf32>
    %c0_1 = arith.constant 0 : index
    %c0_2 = arith.constant 0 : index
    %c0_3 = arith.constant 0 : index
    %1 = vector.load %arg4[%c0_1, %c0_2, %c0_3] : memref<1x108x512xf32, #tpu.memory_space<vmem>>, vector<1x108x512xf32>
    %2 = vector.shape_cast %1 : vector<1x108x512xf32> to vector<108x512xf32>
    %cst = arith.constant dense<0.000000e+00> : vector<8x512xf32>
    %3 = tpu.matmul %0, %2, %cst {dimension_numbers = #tpu.dot_dimension_numbers<[1], [0], [0], [1], [0, 0, 1, 1], [], []>} : vector<8x108xf32>, vector<108x512xf32>, vector<8x512xf32> -> vector<8x512xf32>
    %cst_4 = arith.constant dense<0.000000e+00> : vector<8xf32>
    %4 = vector.multi_reduction <add>, %3, %cst_4 [1] : vector<8x512xf32> to vector<8xf32>
    %5 = vector.shape_cast %4 : vector<8xf32> to vector<8x1xf32>
    %c0_5 = arith.constant 0 : index
    %c0_6 = arith.constant 0 : index
    %c0_7 = arith.constant 0 : index
    %c0_8 = arith.constant 0 : index
    %6 = vector.load %arg6[%c0_5, %c0_6, %c0_7, %c0_8] : memref<1x1x8x1xf32, #tpu.memory_space<vmem>>, vector<1x1x8x1xf32>
    %7 = vector.shape_cast %6 : vector<1x1x8x1xf32> to vector<8x1xf32>
    %8 = vector.shape_cast %5 : vector<8x1xf32> to vector<1x1x8x1xf32>
    tpu.vector_store %arg6[%c0_5, %c0_6, %c0_7, %c0_8], %8 {strides = array<i32>} : memref<1x1x8x1xf32, #tpu.memory_space<vmem>>, vector<1x1x8x1xf32>,
    %9 = arith.mulf %3, %3 : vector<8x512xf32>
    %cst_9 = arith.constant dense<0.000000e+00> : vector<8xf32>
    %10 = vector.multi_reduction <add>, %9, %cst_9 [1] : vector<8x512xf32> to vector<8xf32>
    %11 = vector.shape_cast %10 : vector<8xf32> to vector<8x1xf32>
    %c0_10 = arith.constant 0 : index
    %c0_11 = arith.constant 0 : index
    %c0_12 = arith.constant 0 : index
    %c0_13 = arith.constant 0 : index
    %12 = vector.load %arg7[%c0_10, %c0_11, %c0_12, %c0_13] : memref<1x1x8x1xf32, #tpu.memory_space<vmem>>, vector<1x1x8x1xf32>
    %13 = vector.shape_cast %12 : vector<1x1x8x1xf32> to vector<8x1xf32>
    %14 = vector.shape_cast %11 : vector<8x1xf32> to vector<1x1x8x1xf32>
    tpu.vector_store %arg7[%c0_10, %c0_11, %c0_12, %c0_13], %14 {strides = array<i32>} : memref<1x1x8x1xf32, #tpu.memory_space<vmem>>, vector<1x1x8x1xf32>,
    %c0_14 = arith.constant 0 : index
    %c0_15 = arith.constant 0 : index
    %15 = vector.load %arg3[%c0_14, %c0_15] : memref<8x1xf32, #tpu.memory_space<vmem>>, vector<8x1xf32>
    %16 = vector.broadcast %15 : vector<8x1xf32> to vector<8x512xf32>
    %17 = arith.addf %3, %16 : vector<8x512xf32>
    %c0_16 = arith.constant 0 : index
    %c0_17 = arith.constant 0 : index
    %c0_18 = arith.constant 0 : index
    %18 = vector.load %arg5[%c0_16, %c0_17, %c0_18] : memref<1x8x512xf32, #tpu.memory_space<vmem>>, vector<1x8x512xf32>
    %19 = vector.shape_cast %18 : vector<1x8x512xf32> to vector<8x512xf32>
    %20 = vector.shape_cast %17 : vector<8x512xf32> to vector<1x8x512xf32>
    tpu.vector_store %arg5[%c0_16, %c0_17, %c0_18], %20 {strides = array<i32>} : memref<1x8x512xf32, #tpu.memory_space<vmem>>, vector<1x8x512xf32>,
    return
  }
  func.func @transform_0(%arg0: i32, %arg1: i32) -> (i32, i32) {
    %c0_i32 = arith.constant 0 : i32
    %c0_i32_0 = arith.constant 0 : i32
    %c0_i32_1 = arith.constant 0 : i32
    return %c0_i32, %c0_i32_0 : i32, i32
  }
  func.func @transform_1(%arg0: i32, %arg1: i32) -> (i32, i32) {
    %c0_i32 = arith.constant 0 : i32
    %c0_i32_0 = arith.constant 0 : i32
    %c0_i32_1 = arith.constant 0 : i32
    return %c0_i32, %c0_i32_0 : i32, i32
  }
  func.func @transform_2(%arg0: i32, %arg1: i32) -> (i32, i32, i32) {
    %c0_i32 = arith.constant 0 : i32
    %c0_i32_0 = arith.constant 0 : i32
    return %arg0, %c0_i32, %arg1 : i32, i32, i32
  }
  func.func @transform_3(%arg0: i32, %arg1: i32) -> (i32, i32, i32) {
    %c0_i32 = arith.constant 0 : i32
    %c0_i32_0 = arith.constant 0 : i32
    return %arg0, %c0_i32, %arg1 : i32, i32, i32
  }
  func.func @transform_4(%arg0: i32, %arg1: i32) -> (i32, i32, i32, i32) {
    %c0_i32 = arith.constant 0 : i32
    %c0_i32_0 = arith.constant 0 : i32
    %c0_i32_1 = arith.constant 0 : i32
    return %arg0, %arg1, %c0_i32, %c0_i32_0 : i32, i32, i32, i32
  }
  func.func @transform_5(%arg0: i32, %arg1: i32) -> (i32, i32, i32, i32) {
    %c0_i32 = arith.constant 0 : i32
    %c0_i32_0 = arith.constant 0 : i32
    %c0_i32_1 = arith.constant 0 : i32
    return %arg0, %arg1, %c0_i32, %c0_i32_0 : i32, i32, i32, i32
  }
}

module attributes {stable_mosaic.version = 11 : i64} {
  func.func @_bn_silu_kernel(%arg0: i32, %arg1: i32, %arg2: memref<1x8x512xf32, #tpu.memory_space<vmem>>, %arg3: memref<8x1xf32, #tpu.memory_space<vmem>>, %arg4: memref<8x1xf32, #tpu.memory_space<vmem>>, %arg5: memref<1x8x512xf32, #tpu.memory_space<vmem>>) attributes {dimension_semantics = [#tpu.dimension_semantics<parallel>, #tpu.dimension_semantics<parallel>], iteration_bounds = array<i64: 2, 1>, scalar_prefetch = 0 : i64, scratch_operands = 0 : i64, tpu.core_type = #tpu.core_type<tc>, window_params = [{transform_indices = @transform_0, window_bounds = array<i64: 1, 8, 512>}, {pipeline_mode = #tpu.pipeline_mode<synchronous>, transform_indices = @transform_1, window_bounds = array<i64: 8, 1>}, {pipeline_mode = #tpu.pipeline_mode<synchronous>, transform_indices = @transform_2, window_bounds = array<i64: 8, 1>}, {transform_indices = @transform_3, window_bounds = array<i64: 1, 8, 512>}]} {
    %c0 = arith.constant 0 : index
    %c0_0 = arith.constant 0 : index
    %c0_1 = arith.constant 0 : index
    %0 = vector.load %arg2[%c0, %c0_0, %c0_1] : memref<1x8x512xf32, #tpu.memory_space<vmem>>, vector<1x8x512xf32>
    %1 = vector.shape_cast %0 : vector<1x8x512xf32> to vector<8x512xf32>
    %c0_2 = arith.constant 0 : index
    %c0_3 = arith.constant 0 : index
    %2 = vector.load %arg3[%c0_2, %c0_3] : memref<8x1xf32, #tpu.memory_space<vmem>>, vector<8x1xf32>
    %3 = vector.broadcast %2 : vector<8x1xf32> to vector<8x512xf32>
    %4 = arith.mulf %1, %3 : vector<8x512xf32>
    %c0_4 = arith.constant 0 : index
    %c0_5 = arith.constant 0 : index
    %5 = vector.load %arg4[%c0_4, %c0_5] : memref<8x1xf32, #tpu.memory_space<vmem>>, vector<8x1xf32>
    %6 = vector.broadcast %5 : vector<8x1xf32> to vector<8x512xf32>
    %7 = arith.addf %4, %6 : vector<8x512xf32>
    %cst = arith.constant 0.000000e+00 : f32
    %8 = vector.broadcast %cst : f32 to vector<8x512xf32>
    %9 = arith.subf %8, %7 : vector<8x512xf32>
    %10 = math.exp %9 : vector<8x512xf32>
    %cst_6 = arith.constant 1.000000e+00 : f32
    %11 = vector.broadcast %cst_6 : f32 to vector<8x512xf32>
    %12 = arith.addf %11, %10 : vector<8x512xf32>
    %13 = tpu.reciprocal %12 : vector<8x512xf32> -> vector<8x512xf32>
    %14 = arith.mulf %7, %13 : vector<8x512xf32>
    %c0_7 = arith.constant 0 : index
    %c0_8 = arith.constant 0 : index
    %c0_9 = arith.constant 0 : index
    %15 = vector.load %arg5[%c0_7, %c0_8, %c0_9] : memref<1x8x512xf32, #tpu.memory_space<vmem>>, vector<1x8x512xf32>
    %16 = vector.shape_cast %15 : vector<1x8x512xf32> to vector<8x512xf32>
    %17 = vector.shape_cast %14 : vector<8x512xf32> to vector<1x8x512xf32>
    tpu.vector_store %arg5[%c0_7, %c0_8, %c0_9], %17 {strides = array<i32>} : memref<1x8x512xf32, #tpu.memory_space<vmem>>, vector<1x8x512xf32>,
    return
  }
  func.func @transform_0(%arg0: i32, %arg1: i32) -> (i32, i32, i32) {
    %c0_i32 = arith.constant 0 : i32
    %c0_i32_0 = arith.constant 0 : i32
    return %arg0, %c0_i32, %arg1 : i32, i32, i32
  }
  func.func @transform_1(%arg0: i32, %arg1: i32) -> (i32, i32) {
    %c0_i32 = arith.constant 0 : i32
    %c0_i32_0 = arith.constant 0 : i32
    %c0_i32_1 = arith.constant 0 : i32
    return %c0_i32, %c0_i32_0 : i32, i32
  }
  func.func @transform_2(%arg0: i32, %arg1: i32) -> (i32, i32) {
    %c0_i32 = arith.constant 0 : i32
    %c0_i32_0 = arith.constant 0 : i32
    %c0_i32_1 = arith.constant 0 : i32
    return %c0_i32, %c0_i32_0 : i32, i32
  }
  func.func @transform_3(%arg0: i32, %arg1: i32) -> (i32, i32, i32) {
    %c0_i32 = arith.constant 0 : i32
    %c0_i32_0 = arith.constant 0 : i32
    return %arg0, %c0_i32, %arg1 : i32, i32, i32
  }
}

</mosaic_0001>

<llo_original>
// kernel: basic_block_forward.2
$region0: #{basic_block_forward.2}
  #allocation0 [shape = 'u32[]', space=smem, size = 0x4, offset = 0x4, fixed_abs, tag = 'smem constant byte address 0x4 - core index']
  #allocation1 [shape = 'u32[144,128]{1,0:T(1,128)}', space=vmem, size = 0x12000, scoped, tag = 'internal scratch']
  %s0 = inlined_call_operand.vmem [shape: f32[8,108], index: 0, kind: input, shape index: {}]
  %s1 = inlined_call_operand.vmem [shape: f32[8,1], index: 1, kind: input, shape index: {}]
  %s2 = inlined_call_operand.vmem [shape: f32[2,108,512], index: 2, kind: input, shape index: {}]
  %s3 = inlined_call_operand.vmem [shape: f32[2,8,512], index: 3, kind: output, shape index: {0}]
  %s4 = inlined_call_operand.vmem [shape: f32[2,1,8,1], index: 4, kind: output, shape index: {1}]
  %s5 = inlined_call_operand.vmem [shape: f32[2,1,8,1], index: 5, kind: output, shape index: {2}]
  %6 = xla_tuple %s3, %s4, %s5
  %s7 = sld [smem:[#allocation0]]
  $region61: #{basic_block_forward.2} parent=0
    _
  %s9 = ssub.s32 1, %s7
  %s10 = scalar_select 0, %s9, %s7
  loop: start=0, step=1, limit=4
  $region2: #{basic_block_forward.2} parent=0 // loop_pre_header
    _
  $region3: #{basic_block_forward.2} parent=0 // loop_header
    %s12 = sphi 0, %s16
    %p13 = scmp.ge.s32.totalorder %s12, 4
    %s19 = sphi 0, %s31
    %s20 = sphi 0, %s27
    %s21 = sphi 0, %s19
    %s22 = sphi 0, %s20
    %s23 = sphi 0, %s21
    %s24 = sphi 0, %s22
    %s32 = sphi 0, %s32
    %s34 = sphi 0, %s32
    %s35 = sphi 0, %s34
    %s49 = sphi 0, %s35
    %s53 = sphi 0, %s53
    %s55 = sphi 0, %s53
    %s56 = sphi 0, %s55
    %s70 = sphi 0, %s56
    %s78 = sphi 0, %s80
    %s81 = sphi 0, %s78
    %s82 = sphi 0, %s81
    %s98 = sphi 0, %s82
    %s106 = sphi 0, %s108
    %s109 = sphi 0, %s106
    %s110 = sphi 0, %s109
    %s126 = sphi 0, %s110
    %s134 = sphi 0, %s136
    %s137 = sphi 0, %s134
    %s138 = sphi 0, %s137
    %s154 = sphi 0, %s138
    %s162 = sphi 0, %s164
    %s165 = sphi 0, %s162
    %s166 = sphi 0, %s165
    %s182 = sphi 0, %s166
  $region4: #{basic_block_forward.2} parent=0 // loop_header_branch
    %15 = sbr.rel (%p13) target = $region8
  $region5: #{basic_block_forward.2} parent=0 // loop_body
    %s17 = ssub.s32 %s12, 1
    %s18 = ssub.s32 %s12, 2
    %s25 = sadd.s32 1, %s20
    %p26 = scmp.ge.s32.totalorder %s25, 1
    %s27 = scalar_select %p26, 0, %s25
    %s28 = sadd.s32 1, %s19
    %s29 = scalar_select %p26, %s28, %s19
    %p30 = scmp.ge.s32.totalorder %s29, 2
    %s31 = scalar_select %p30, 0, %s29
    %s33 = sadd.s32 %s32, 1
    %p36 = scmp.eq.s32.totalorder %s12, 1
    %p37 = scmp.ne.s32.totalorder %s32, %s34
    %p38 = scmp.eq.s32.totalorder %s12, 0
    %p39 = por %p37, %p38
    %p40 = scmp.ne.s32.totalorder %s32, %s34
    %p41 = scmp.eq.s32.totalorder %s17, 1
    %p42 = por %p40, %p41
    %p43 = scmp.ne.s32.totalorder %s34, %s35
    %p44 = scmp.eq.s32.totalorder %s17, 0
    %p45 = por %p43, %p44
    %p46 = scmp.ne.s32.totalorder %s34, %s35
    %p47 = scmp.eq.s32.totalorder %s18, 1
    %p48 = por %p46, %p47
    %p50 = scmp.ne.s32.totalorder %s35, %s49
    %p51 = scmp.eq.s32.totalorder %s18, 0
    %p52 = por %p50, %p51
    %s54 = sadd.s32 %s53, 1
    %p57 = scmp.eq.s32.totalorder %s12, 1
    %p58 = scmp.ne.s32.totalorder %s53, %s55
    %p59 = scmp.eq.s32.totalorder %s12, 0
    %p60 = por %p58, %p59
    %p61 = scmp.ne.s32.totalorder %s53, %s55
    %p62 = scmp.eq.s32.totalorder %s17, 1
    %p63 = por %p61, %p62
    %p64 = scmp.ne.s32.totalorder %s55, %s56
    %p65 = scmp.eq.s32.totalorder %s17, 0
    %p66 = por %p64, %p65
    %p67 = scmp.ne.s32.totalorder %s55, %s56
    %p68 = scmp.eq.s32.totalorder %s18, 1
    %p69 = por %p67, %p68
    %p71 = scmp.ne.s32.totalorder %s56, %s70
    %p72 = scmp.eq.s32.totalorder %s18, 0
    %p73 = por %p71, %p72
    %s74 = ssub.s32 %s19, %s31
    %s75 = ssub.s32 %s20, %s27
    %s76 = sor.u32 %s74, %s75
    %p77 = scmp.eq.s32.totalorder %s76, 0
    %s79 = sadd.s32 %s78, 1
    %s80 = scalar_select %p77, %s78, %s79
    %p83 = pneg %p77
    %p84 = scmp.eq.s32.totalorder %s12, 1
    %p85 = por %p83, %p84
    %p86 = scmp.ne.s32.totalorder %s78, %s81
    %p87 = scmp.eq.s32.totalorder %s12, 0
    %p88 = por %p86, %p87
    %p89 = scmp.ne.s32.totalorder %s78, %s81
    %p90 = scmp.eq.s32.totalorder %s17, 1
    %p91 = por %p89, %p90
    %p92 = scmp.ne.s32.totalorder %s81, %s82
    %p93 = scmp.eq.s32.totalorder %s17, 0
    %p94 = por %p92, %p93
    %p95 = scmp.ne.s32.totalorder %s81, %s82
    %p96 = scmp.eq.s32.totalorder %s18, 1
    %p97 = por %p95, %p96
    %p99 = scmp.ne.s32.totalorder %s82, %s98
    %p100 = scmp.eq.s32.totalorder %s18, 0
    %p101 = por %p99, %p100
    %s102 = ssub.s32 %s19, %s31
    %s103 = ssub.s32 %s20, %s27
    %s104 = sor.u32 %s102, %s103
    %p105 = scmp.eq.s32.totalorder %s104, 0
    %s107 = sadd.s32 %s106, 1
    %s108 = scalar_select %p105, %s106, %s107
    %p111 = pneg %p105
    %p112 = scmp.eq.s32.totalorder %s12, 1
    %p113 = por %p111, %p112
    %p114 = scmp.ne.s32.totalorder %s106, %s109
    %p115 = scmp.eq.s32.totalorder %s12, 0
    %p116 = por %p114, %p115
    %p117 = scmp.ne.s32.totalorder %s106, %s109
    %p118 = scmp.eq.s32.totalorder %s17, 1
    %p119 = por %p117, %p118
    %p120 = scmp.ne.s32.totalorder %s109, %s110
    %p121 = scmp.eq.s32.totalorder %s17, 0
    %p122 = por %p120, %p121
    %p123 = scmp.ne.s32.totalorder %s109, %s110
    %p124 = scmp.eq.s32.totalorder %s18, 1
    %p125 = por %p123, %p124
    %p127 = scmp.ne.s32.totalorder %s110, %s126
    %p128 = scmp.eq.s32.totalorder %s18, 0
    %p129 = por %p127, %p128
    %s130 = ssub.s32 %s19, %s31
    %s131 = ssub.s32 %s20, %s27
    %s132 = sor.u32 %s130, %s131
    %p133 = scmp.eq.s32.totalorder %s132, 0
    %s135 = sadd.s32 %s134, 1
    %s136 = scalar_select %p133, %s134, %s135
    %p139 = pneg %p133
    %p140 = scmp.eq.s32.totalorder %s12, 1
    %p141 = por %p139, %p140
    %p142 = scmp.ne.s32.totalorder %s134, %s137
    %p143 = scmp.eq.s32.totalorder %s12, 0
    %p144 = por %p142, %p143
    %p145 = scmp.ne.s32.totalorder %s134, %s137
    %p146 = scmp.eq.s32.totalorder %s17, 1
    %p147 = por %p145, %p146
    %p148 = scmp.ne.s32.totalorder %s137, %s138
    %p149 = scmp.eq.s32.totalorder %s17, 0
    %p150 = por %p148, %p149
    %p151 = scmp.ne.s32.totalorder %s137, %s138
    %p152 = scmp.eq.s32.totalorder %s18, 1
    %p153 = por %p151, %p152
    %p155 = scmp.ne.s32.totalorder %s138, %s154
    %p156 = scmp.eq.s32.totalorder %s18, 0
    %p157 = por %p155, %p156
    %s158 = ssub.s32 %s19, %s31
    %s159 = ssub.s32 %s20, %s27
    %s160 = sor.u32 %s158, %s159
    %p161 = scmp.eq.s32.totalorder %s160, 0
    %s163 = sadd.s32 %s162, 1
    %s164 = scalar_select %p161, %s162, %s163
    %p167 = pneg %p161
    %p168 = scmp.eq.s32.totalorder %s12, 1
    %p169 = por %p167, %p168
    %p170 = scmp.ne.s32.totalorder %s162, %s165
    %p171 = scmp.eq.s32.totalorder %s12, 0
    %p172 = por %p170, %p171
    %p173 = scmp.ne.s32.totalorder %s162, %s165
    %p174 = scmp.eq.s32.totalorder %s17, 1
    %p175 = por %p173, %p174
    %p176 = scmp.ne.s32.totalorder %s165, %s166
    %p177 = scmp.eq.s32.totalorder %s17, 0
    %p178 = por %p176, %p177
    %p179 = scmp.ne.s32.totalorder %s165, %s166
    %p180 = scmp.eq.s32.totalorder %s18, 1
    %p181 = por %p179, %p180
    %p183 = scmp.ne.s32.totalorder %s166, %s182
    %p184 = scmp.eq.s32.totalorder %s18, 0
    %p185 = por %p183, %p184
    %p186 = scmp.le.s32.totalorder 1, %s12
    %p187 = scmp.lt.s32.totalorder %s12, 3
    %p188 = pnand %p186, %p187
    %p189 = pneg %p188
    // Predicated region
    $region9: #{basic_block_forward.2} parent=5 // pred_check
      _
    $region10: #{basic_block_forward.2} parent=5 // pred_check_branch
      %191 = sbr.rel (%p188) target = $region12
    $region11: #{basic_block_forward.2} parent=5 // pred_region
      %s192 = ssub.s32 %s12, 1
      // Predicated region
      $region13: #{basic_block_forward.2} parent=11 // pred_check
        %p193 = pneg %p45
      $region14: #{basic_block_forward.2} parent=11 // pred_check_branch
        %195 = sbr.rel (%p193) target = $region16
      $region15: #{basic_block_forward.2} parent=11 // pred_region
        _
      $region16: #{basic_block_forward.2} parent=11 // pred_fallthru
        _
      // Predicated region
      $region17: #{basic_block_forward.2} parent=11 // pred_check
        %p196 = pneg %p66
      $region18: #{basic_block_forward.2} parent=11 // pred_check_branch
        %198 = sbr.rel (%p196) target = $region20
      $region19: #{basic_block_forward.2} parent=11 // pred_region
        _
      $region20: #{basic_block_forward.2} parent=11 // pred_fallthru
        _
    $region12: #{basic_block_forward.2} parent=5 // pred_fallthru
      _
    %p199 = scmp.lt.s32.totalorder %s12, 2
    // Predicated region
    $region21: #{basic_block_forward.2} parent=5 // pred_check
      %p200 = pneg %p199
    $region22: #{basic_block_forward.2} parent=5 // pred_check_branch
      %202 = sbr.rel (%p200) target = $region24
    $region23: #{basic_block_forward.2} parent=5 // pred_region
      // Predicated region
      $region25: #{basic_block_forward.2} parent=23 // pred_check
        %p203 = pneg %p88
      $region26: #{basic_block_forward.2} parent=23 // pred_check_branch
        %205 = sbr.rel (%p203) target = $region28
      $region27: #{basic_block_forward.2} parent=23 // pred_region
        %s206 = smul.u32 4, %s20
        %p207 = scmp.lt.s32.totalorder %s19, 1
        %s208 = scalar_select %p207, %s19, 1
        %p209 = scmp.lt.s32.totalorder %s206, 3
        %s210 = scalar_select %p209, %s206, 3
        %s211 = smul.addr %s208, 56
        %s212 = sadd.s32 %s210, %s211
        %s213 = smul.addr %s212, 8
        %s214 = scalar_lea.vmem %s2, %s213
        %s215 = smul.u32 4, %s20
      $region28: #{basic_block_forward.2} parent=23 // pred_fallthru
        _
    $region24: #{basic_block_forward.2} parent=5 // pred_fallthru
      _
    %p216 = scmp.le.s32.totalorder 1, %s12
    %p217 = scmp.lt.s32.totalorder %s12, 3
    %p218 = pnand %p216, %p217
    %p219 = pneg %p218
    // Predicated region
    $region29: #{basic_block_forward.2} parent=5 // pred_check
      _
    $region30: #{basic_block_forward.2} parent=5 // pred_check_branch
      %221 = sbr.rel (%p218) target = $region32
    $region31: #{basic_block_forward.2} parent=5 // pred_region
      %s222 = ssub.s32 %s12, 1
      %p223 = pneg %p45
      %p224 = pneg %p42
      %p225 = pneg %p66
      %p226 = pneg %p63
      %s227 = smul.u32 4, %s22
      %p228 = scmp.lt.s32.totalorder %s21, 1
      %s229 = scalar_select %p228, %s21, 1
      %p230 = scmp.lt.s32.totalorder %s227, 3
      %s231 = scalar_select %p230, %s227, 3
      %s232 = smul.addr %s229, 56
      %s233 = sadd.s32 %s231, %s232
      %s234 = smul.addr %s233, 8
      %s235 = scalar_lea.vmem %s2, %s234
      %p236 = pneg %p94
      %p237 = pneg %p91
      %p238 = pneg %p122
      %p239 = pneg %p119
      %s240 = smul.u32 4, %s22
      %p241 = scmp.lt.s32.totalorder %s21, 1
      %s242 = scalar_select %p241, %s21, 1
      %p243 = scmp.lt.s32.totalorder %s240, 3
      %s244 = scalar_select %p243, %s240, 3
      %s245 = smul.addr %s242, 4
      %s246 = sadd.s32 %s244, %s245
      %s247 = smul.addr %s246, 8
      %s248 = scalar_lea.vmem %s3, %s247
      %p249 = pneg %p150
      %p250 = pneg %p147
      %p251 = scmp.lt.s32.totalorder %s21, 1
      %s252 = scalar_select %p251, %s21, 1
      %p253 = scmp.lt.s32.totalorder %s22, 0
      %s254 = scalar_select %p253, %s22, 0
      %s255 = sadd.s32 %s254, %s252
      %s256 = smul.addr %s255, 8
      %s257 = scalar_lea.vmem %s4, %s256
      %p258 = pneg %p178
      %p259 = pneg %p175
      %p260 = scmp.lt.s32.totalorder %s21, 1
      %s261 = scalar_select %p260, %s21, 1
      %p262 = scmp.lt.s32.totalorder %s22, 0
      %s263 = scalar_select %p262, %s22, 0
      %s264 = sadd.s32 %s263, %s261
      %s265 = smul.addr %s264, 8
      %s266 = scalar_lea.vmem %s5, %s265
      %s267 = smul.u32 4, %s22
      %p268 = scmp.lt.s32.totalorder %s21, 1
      %s269 = scalar_select %p268, %s21, 1
      %p270 = scmp.lt.s32.totalorder %s267, 3
      %s271 = scalar_select %p270, %s267, 3
      %s272 = smul.addr %s269, 56
      %s273 = sadd.s32 %s271, %s272
      %s274 = smul.addr %s273, 8
      %s275 = scalar_lea.vmem %s2, %s274
      %s276 = smul.u32 4, %s22
      %s277 = smul.u32 4, %s22
      %p278 = scmp.lt.s32.totalorder %s21, 1
      %s279 = scalar_select %p278, %s21, 1
      %p280 = scmp.lt.s32.totalorder %s277, 3
      %s281 = scalar_select %p280, %s277, 3
      %s282 = smul.addr %s279, 4
      %s283 = sadd.s32 %s281, %s282
      %s284 = smul.addr %s283, 8
      %s285 = scalar_lea.vmem %s3, %s284
      %s286 = smul.u32 4, %s22
      %p287 = scmp.lt.s32.totalorder %s21, 1
      %s288 = scalar_select %p287, %s21, 1
      %p289 = scmp.lt.s32.totalorder %s22, 0
      %s290 = scalar_select %p289, %s22, 0
      %s291 = sadd.s32 %s290, %s288
      %s292 = smul.addr %s291, 8
      %s293 = scalar_lea.vmem %s4, %s292
      %p294 = scmp.lt.s32.totalorder %s21, 1
      %s295 = scalar_select %p294, %s21, 1
      %p296 = scmp.lt.s32.totalorder %s22, 0
      %s297 = scalar_select %p296, %s22, 0
      %s298 = sadd.s32 %s297, %s295
      %s299 = smul.addr %s298, 8
      %s300 = scalar_lea.vmem %s5, %s299
      %v301 = vld [vmem:[%s0] sm:$0xff]
      %v302 = vld [vmem:[%s275] sm:$0xff]
      %v303 = vld [vmem:[%s275 + $0x8] sm:$0xff]
      %v304 = vld [vmem:[%s275 + $0x10] sm:$0xff]
      %v305 = vld [vmem:[%s275 + $0x18] sm:$0xff]
      %v306 = vld [vmem:[%s275 + $0x20] sm:$0xff]
      %v307 = vld [vmem:[%s275 + $0x28] sm:$0xff]
      %v308 = vld [vmem:[%s275 + $0x30] sm:$0xff]
      %v309 = vld [vmem:[%s275 + $0x38] sm:$0xff]
      %v310 = vld [vmem:[%s275 + $0x40] sm:$0xff]
      %v311 = vld [vmem:[%s275 + $0x48] sm:$0xff]
      %v312 = vld [vmem:[%s275 + $0x50] sm:$0xff]
      %v313 = vld [vmem:[%s275 + $0x58] sm:$0xff]
      %v314 = vld [vmem:[%s275 + $0x60] sm:$0xff]
      %v315 = vld [vmem:[%s275 + $0x68] sm:$0xff]
      %v316 = vld [vmem:[%s275 + $0x70] sm:$0xff]
      %v317 = vld [vmem:[%s275 + $0x78] sm:$0xff]
      %v318 = vld [vmem:[%s275 + $0x80] sm:$0xff]
      %v319 = vld [vmem:[%s275 + $0x88] sm:$0xff]
      %v320 = vld [vmem:[%s275 + $0x90] sm:$0xff]
      %v321 = vld [vmem:[%s275 + $0x98] sm:$0xff]
      %v322 = vld [vmem:[%s275 + $0xa0] sm:$0xff]
      %v323 = vld [vmem:[%s275 + $0xa8] sm:$0xff]
      %v324 = vld [vmem:[%s275 + $0xb0] sm:$0xff]
      %v325 = vld [vmem:[%s275 + $0xb8] sm:$0xff]
      %v326 = vld [vmem:[%s275 + $0xc0] sm:$0xff]
      %v327 = vld [vmem:[%s275 + $0xc8] sm:$0xff]
      %v328 = vld [vmem:[%s275 + $0xd0] sm:$0xff]
      %v329 = vld [vmem:[%s275 + $0xd8] sm:$0xff]
      %v330 = vld [vmem:[%s275 + $0xe0] sm:$0xff]
      %v331 = vld [vmem:[%s275 + $0xe8] sm:$0xff]
      %v332 = vld [vmem:[%s275 + $0xf0] sm:$0xff]
      %v333 = vld [vmem:[%s275 + $0xf8] sm:$0xff]
      %v334 = vld [vmem:[%s275 + $0x100] sm:$0xff]
      %v335 = vld [vmem:[%s275 + $0x108] sm:$0xff]
      %v336 = vld [vmem:[%s275 + $0x110] sm:$0xff]
      %v337 = vld [vmem:[%s275 + $0x118] sm:$0xff]
      %v338 = vld [vmem:[%s275 + $0x120] sm:$0xff]
      %v339 = vld [vmem:[%s275 + $0x128] sm:$0xff]
      %v340 = vld [vmem:[%s275 + $0x130] sm:$0xff]
      %v341 = vld [vmem:[%s275 + $0x138] sm:$0xff]
      %v342 = vld [vmem:[%s275 + $0x140] sm:$0xff]
      %v343 = vld [vmem:[%s275 + $0x148] sm:$0xff]
      %v344 = vld [vmem:[%s275 + $0x150] sm:$0xff]
      %v345 = vld [vmem:[%s275 + $0x158] sm:$0xff]
      %v346 = vld [vmem:[%s275 + $0x160] sm:$0xff]
      %v347 = vld [vmem:[%s275 + $0x168] sm:$0xff]
      %v348 = vld [vmem:[%s275 + $0x170] sm:$0xff]
      %v349 = vld [vmem:[%s275 + $0x178] sm:$0xff]
      %v350 = vld [vmem:[%s275 + $0x180] sm:$0xff]
      %v351 = vld [vmem:[%s275 + $0x188] sm:$0xff]
      %v352 = vld [vmem:[%s275 + $0x190] sm:$0xff]
      %v353 = vld [vmem:[%s275 + $0x198] sm:$0xff]
      %v354 = vld [vmem:[%s275 + $0x1a0] sm:$0xf]
      %v355 = vld [vmem:[%s275 + $0x1a8] sm:$0xf]
      %v356 = vld [vmem:[%s275 + $0x1b0] sm:$0xf]
      %v357 = vld [vmem:[%s275 + $0x1b8] sm:$0xf]
      %vm358 = vcmask 883712
      %v360 = vsel %vm358, %v301, 0
      %vm362 = vcmask 1043456
      %v364 = vsel %vm362, %v354, 0
      %v367 = vsel %vm362, %v355, 0
      %v370 = vsel %vm362, %v356, 0
      %v373 = vsel %vm362, %v357, 0
      %375 = vmatprep.subr.mxu0 %v303
      %376 = vmatpush1.msra.mxu0 %v302
      %377 = vmatprep.subr.mxu0 %v307
      %378 = vmatpush1.msra.mxu0 %v306
      %379 = vmatprep.subr.mxu0 %v311
      %380 = vmatpush1.msra.mxu0 %v310
      %381 = vmatprep.subr.mxu0 %v315
      %382 = vmatpush1.msra.mxu0 %v314
      %383 = vmatprep.subr.mxu0 %v319
      %384 = vmatpush1.msra.mxu0 %v318
      %385 = vmatprep.subr.mxu0 %v323
      %386 = vmatpush1.msra.mxu0 %v322
      %387 = vmatprep.subr.mxu0 %v327
      %388 = vmatpush1.msra.mxu0 %v326
      %389 = vmatprep.subr.mxu0 %v331
      %390 = vmatpush1.msra.mxu0 %v330
      %391 = vmatprep.subr.mxu0 %v335
      %392 = vmatpush1.msra.mxu0 %v334
      %393 = vmatprep.subr.mxu0 %v339
      %394 = vmatpush1.msra.mxu0 %v338
      %395 = vmatprep.subr.mxu0 %v343
      %396 = vmatpush1.msra.mxu0 %v342
      %397 = vmatprep.subr.mxu0 %v347
      %398 = vmatpush1.msra.mxu0 %v346
      %399 = vmatprep.subr.mxu0 %v351
      %400 = vmatpush1.msra.mxu0 %v350
      %401 = vmatprep.subr.mxu0 %v367
      %402 = vmatpush1.msra.mxu0 %v364
      %403 = vmatprep.subr.mxu0 0.0
      %404 = vmatpush1.msra.mxu0 0.0
      %405 = vmatprep.subr.mxu0 0.0
      %406 = vmatpush1.msra.mxu0 0.0
      %407 = vmatprep.subr.mxu0 0.0
      %408 = vmatpush1.msra.mxu0 0.0
      %409 = vmatprep.subr.mxu0 0.0
      %410 = vmatpush1.msra.mxu0 0.0
      %411 = vmatprep.subr.mxu0 0.0
      %412 = vmatpush1.msra.mxu0 0.0
      %413 = vmatprep.subr.mxu0 0.0
      %414 = vmatpush1.msra.mxu0 0.0
      %415 = vmatprep.subr.mxu0 0.0
      %416 = vmatpush1.msra.mxu0 0.0
      %417 = vmatprep.subr.mxu0 0.0
      %418 = vmatpush1.msra.mxu0 0.0
      %419 = vmatprep.subr.mxu0 0.0
      %420 = vmatpush1.msra.mxu0 0.0
      %421 = vmatprep.subr.mxu0 0.0
      %422 = vmatpush1.msra.mxu0 0.0
      %423 = vmatprep.subr.mxu0 0.0
      %424 = vmatpush1.msra.mxu0 0.0
      %425 = vmatprep.subr.mxu0 0.0
      %426 = vmatpush1.msra.mxu0 0.0
      %427 = vmatprep.subr.mxu0 0.0
      %428 = vmatpush1.msra.mxu0 0.0
      %429 = vmatprep.subr.mxu0 0.0
      %430 = vmatpush1.msra.mxu0 0.0
      %431 = vmatprep.subr.mxu0 0.0
      %432 = vmatpush1.msra.mxu0 0.0
      %433 = vmatprep.subr.mxu0 0.0
      %434 = vmatpush1.msra.mxu0 0.0
      %435 = vmatprep.subr.mxu0 0.0
      %436 = vmatpush1.msra.mxu0 0.0
      %437 = vmatprep.subr.mxu0 0.0
      %438 = vmatpush1.msra.mxu0 0.0
      %439 = vmatprep.mubr.f32.mxu0 0.0
      %440 = vmatmul.mubr.f32.gmra.mrb[0].mxu0 %v360
      %v441 = vpop.f32.mrb[0].mxu0
      %v442 = vadd.f32 0.0, %v441
      %v443 = vpop.f32.mrb[0].mxu0
      %v444 = vadd.f32 0.0, %v443
      %445 = vdwg.mxu0
      %446 = vmatprep.subr.mxu0 %v305
      %447 = vmatpush1.msra.mxu0 %v304
      %448 = vmatprep.subr.mxu0 %v309
      %449 = vmatpush1.msra.mxu0 %v308
      %450 = vmatprep.subr.mxu0 %v313
      %451 = vmatpush1.msra.mxu0 %v312
      %452 = vmatprep.subr.mxu0 %v317
      %453 = vmatpush1.msra.mxu0 %v316
      %454 = vmatprep.subr.mxu0 %v321
      %455 = vmatpush1.msra.mxu0 %v320
      %456 = vmatprep.subr.mxu0 %v325
      %457 = vmatpush1.msra.mxu0 %v324
      %458 = vmatprep.subr.mxu0 %v329
      %459 = vmatpush1.msra.mxu0 %v328
      %460 = vmatprep.subr.mxu0 %v333
      %461 = vmatpush1.msra.mxu0 %v332
      %462 = vmatprep.subr.mxu0 %v337
      %463 = vmatpush1.msra.mxu0 %v336
      %464 = vmatprep.subr.mxu0 %v341
      %465 = vmatpush1.msra.mxu0 %v340
      %466 = vmatprep.subr.mxu0 %v345
      %467 = vmatpush1.msra.mxu0 %v344
      %468 = vmatprep.subr.mxu0 %v349
      %469 = vmatpush1.msra.mxu0 %v348
      %470 = vmatprep.subr.mxu0 %v353
      %471 = vmatpush1.msra.mxu0 %v352
      %472 = vmatprep.subr.mxu0 %v373
      %473 = vmatpush1.msra.mxu0 %v370
      %474 = vmatprep.subr.mxu0 0.0
      %475 = vmatpush1.msra.mxu0 0.0
      %476 = vmatprep.subr.mxu0 0.0
      %477 = vmatpush1.msra.mxu0 0.0
      %478 = vmatprep.subr.mxu0 0.0
      %479 = vmatpush1.msra.mxu0 0.0
      %480 = vmatprep.subr.mxu0 0.0
      %481 = vmatpush1.msra.mxu0 0.0
      %482 = vmatprep.subr.mxu0 0.0
      %483 = vmatpush1.msra.mxu0 0.0
      %484 = vmatprep.subr.mxu0 0.0
      %485 = vmatpush1.msra.mxu0 0.0
      %486 = vmatprep.subr.mxu0 0.0
      %487 = vmatpush1.msra.mxu0 0.0
      %488 = vmatprep.subr.mxu0 0.0
      %489 = vmatpush1.msra.mxu0 0.0
      %490 = vmatprep.subr.mxu0 0.0
      %491 = vmatpush1.msra.mxu0 0.0
      %492 = vmatprep.subr.mxu0 0.0
      %493 = vmatpush1.msra.mxu0 0.0
      %494 = vmatprep.subr.mxu0 0.0
      %495 = vmatpush1.msra.mxu0 0.0
      %496 = vmatprep.subr.mxu0 0.0
      %497 = vmatpush1.msra.mxu0 0.0
      %498 = vmatprep.subr.mxu0 0.0
      %499 = vmatpush1.msra.mxu0 0.0
      %500 = vmatprep.subr.mxu0 0.0
      %501 = vmatpush1.msra.mxu0 0.0
      %502 = vmatprep.subr.mxu0 0.0
      %503 = vmatpush1.msra.mxu0 0.0
      %504 = vmatprep.subr.mxu0 0.0
      %505 = vmatpush1.msra.mxu0 0.0
      %506 = vmatprep.subr.mxu0 0.0
      %507 = vmatpush1.msra.mxu0 0.0
      %508 = vmatprep.subr.mxu0 0.0
      %509 = vmatpush1.msra.mxu0 0.0
      %510 = vmatprep.mubr.f32.mxu0 0.0
      %511 = vmatmul.mubr.f32.gmra.mrb[0].mxu0 %v360
      %v512 = vpop.f32.mrb[0].mxu0
      %v513 = vadd.f32 0.0, %v512
      %v514 = vpop.f32.mrb[0].mxu0
      %v515 = vadd.f32 0.0, %v514
      %516 = vdwg.mxu0
      %v517 = vadd.f32 %v442, %v444
      %v518 = vadd.f32 %v517, %v513
      %v519 = vadd.f32 %v518, %v515
      %520 = vadd.xlane.f32.xlu0 %v519
      %v521 = vpop.xlane.xlu0 %520
      %vm522 = vcmask 7168
      %523 = vst.msk [vmem:[%s293] sm:$0xff] %vm522, %v521
      %v524 = vmul.f32 %v442, %v442
      %v525 = vmul.f32 %v444, %v444
      %v526 = vmul.f32 %v513, %v513
      %v527 = vmul.f32 %v515, %v515
      %v528 = vadd.f32 %v524, %v525
      %v529 = vadd.f32 %v528, %v526
      %v530 = vadd.f32 %v529, %v527
      %531 = vadd.xlane.f32.xlu0 %v530
      %v532 = vpop.xlane.xlu0 %531
      %533 = vst.msk [vmem:[%s300] sm:$0xff] %vm522, %v532
      %v534 = vld [vmem:[%s1] sm:$0xff]
      %536 = vset.pattern.permute.xlu0 0
      %537 = vperm.xlu0 %536, %v534
      %v538 = vpop.permute.xlu0 %537
      %v540 = vadd.f32 %v442, %v538
      %v541 = vadd.f32 %v444, %v538
      %v542 = vadd.f32 %v513, %v538
      %v543 = vadd.f32 %v515, %v538
      %544 = vst [vmem:[%s285] sm:$0xff] %v540
      %545 = vst [vmem:[%s285 + $0x8] sm:$0xff] %v541
      %546 = vst [vmem:[%s285 + $0x10] sm:$0xff] %v542
      %547 = vst [vmem:[%s285 + $0x18] sm:$0xff] %v543
      %s548 = smul.u32 4, %s22
      %p549 = scmp.lt.s32.totalorder %s21, 1
      %s550 = scalar_select %p549, %s21, 1
      %p551 = scmp.lt.s32.totalorder %s548, 3
      %s552 = scalar_select %p551, %s548, 3
      %s553 = smul.addr %s550, 4
      %s554 = sadd.s32 %s552, %s553
      %s555 = smul.addr %s554, 8
      %s556 = scalar_lea.vmem %s3, %s555
      %p557 = scmp.lt.s32.totalorder %s21, 1
      %s558 = scalar_select %p557, %s21, 1
      %p559 = scmp.lt.s32.totalorder %s22, 0
      %s560 = scalar_select %p559, %s22, 0
      %s561 = sadd.s32 %s560, %s558
      %s562 = smul.addr %s561, 8
      %s563 = scalar_lea.vmem %s4, %s562
      %p564 = scmp.lt.s32.totalorder %s21, 1
      %s565 = scalar_select %p564, %s21, 1
      %p566 = scmp.lt.s32.totalorder %s22, 0
      %s567 = scalar_select %p566, %s22, 0
      %s568 = sadd.s32 %s567, %s565
      %s569 = smul.addr %s568, 8
      %s570 = scalar_lea.vmem %s5, %s569
      // Predicated region
      $region33: #{basic_block_forward.2} parent=31 // pred_check
        %p571 = pneg %p119
      $region34: #{basic_block_forward.2} parent=31 // pred_check_branch
        %573 = sbr.rel (%p571) target = $region36
      $region35: #{basic_block_forward.2} parent=31 // pred_region
        %s574 = smul.u32 4, %s22
      $region36: #{basic_block_forward.2} parent=31 // pred_fallthru
        _
      // Predicated region
      $region37: #{basic_block_forward.2} parent=31 // pred_check
        %p575 = pneg %p147
      $region38: #{basic_block_forward.2} parent=31 // pred_check_branch
        %577 = sbr.rel (%p575) target = $region40
      $region39: #{basic_block_forward.2} parent=31 // pred_region
        _
      $region40: #{basic_block_forward.2} parent=31 // pred_fallthru
        _
      // Predicated region
      $region41: #{basic_block_forward.2} parent=31 // pred_check
        %p578 = pneg %p175
      $region42: #{basic_block_forward.2} parent=31 // pred_check_branch
        %580 = sbr.rel (%p578) target = $region44
      $region43: #{basic_block_forward.2} parent=31 // pred_region
        _
      $region44: #{basic_block_forward.2} parent=31 // pred_fallthru
        _
    $region32: #{basic_block_forward.2} parent=5 // pred_fallthru
      _
    %p581 = scmp.le.s32.totalorder 2, %s12
    // Predicated region
    $region45: #{basic_block_forward.2} parent=5 // pred_check
      %p582 = pneg %p581
    $region46: #{basic_block_forward.2} parent=5 // pred_check_branch
      %584 = sbr.rel (%p582) target = $region48
    $region47: #{basic_block_forward.2} parent=5 // pred_region
      %s585 = ssub.s32 %s12, 2
      // Predicated region
      $region49: #{basic_block_forward.2} parent=47 // pred_check
        %p586 = pneg %p125
      $region50: #{basic_block_forward.2} parent=47 // pred_check_branch
        %588 = sbr.rel (%p586) target = $region52
      $region51: #{basic_block_forward.2} parent=47 // pred_region
        %s589 = smul.u32 4, %s24
        %p590 = scmp.lt.s32.totalorder %s23, 1
        %s591 = scalar_select %p590, %s23, 1
        %p592 = scmp.lt.s32.totalorder %s589, 3
        %s593 = scalar_select %p592, %s589, 3
        %s594 = smul.addr %s591, 4
        %s595 = sadd.s32 %s593, %s594
        %s596 = smul.addr %s595, 8
        %s597 = scalar_lea.vmem %s3, %s596
      $region52: #{basic_block_forward.2} parent=47 // pred_fallthru
        _
      // Predicated region
      $region53: #{basic_block_forward.2} parent=47 // pred_check
        %p598 = pneg %p153
      $region54: #{basic_block_forward.2} parent=47 // pred_check_branch
        %600 = sbr.rel (%p598) target = $region56
      $region55: #{basic_block_forward.2} parent=47 // pred_region
        %p601 = scmp.lt.s32.totalorder %s23, 1
        %s602 = scalar_select %p601, %s23, 1
        %p603 = scmp.lt.s32.totalorder %s24, 0
        %s604 = scalar_select %p603, %s24, 0
        %s605 = sadd.s32 %s604, %s602
        %s606 = smul.addr %s605, 8
        %s607 = scalar_lea.vmem %s4, %s606
      $region56: #{basic_block_forward.2} parent=47 // pred_fallthru
        _
      // Predicated region
      $region57: #{basic_block_forward.2} parent=47 // pred_check
        %p608 = pneg %p181
      $region58: #{basic_block_forward.2} parent=47 // pred_check_branch
        %610 = sbr.rel (%p608) target = $region60
      $region59: #{basic_block_forward.2} parent=47 // pred_region
        %p611 = scmp.lt.s32.totalorder %s23, 1
        %s612 = scalar_select %p611, %s23, 1
        %p613 = scmp.lt.s32.totalorder %s24, 0
        %s614 = scalar_select %p613, %s24, 0
        %s615 = sadd.s32 %s614, %s612
        %s616 = smul.addr %s615, 8
        %s617 = scalar_lea.vmem %s5, %s616
      $region60: #{basic_block_forward.2} parent=47 // pred_fallthru
        _
    $region48: #{basic_block_forward.2} parent=5 // pred_fallthru
      _
  $region6: #{basic_block_forward.2} parent=0 // loop_footer
    %s16 = sadd.s32 1, %s12
  $region7: #{basic_block_forward.2} parent=0 // loop_footer_branch
    %11 = sbr.rel target = $region3
  $region8: #{basic_block_forward.2} parent=0 // loop_exit
    _

// kernel: basic_block_forward.3
$region0: #{basic_block_forward.3}
  #allocation0 [shape = 'u32[]', space=smem, size = 0x4, offset = 0x4, fixed_abs, tag = 'smem constant byte address 0x4 - core index']
  #allocation1 [shape = 'u32[144,128]{1,0:T(1,128)}', space=vmem, size = 0x12000, scoped, tag = 'internal scratch']
  %s0 = inlined_call_operand.vmem [shape: f32[2,8,512], index: 0, kind: input, shape index: {}]
  %s1 = inlined_call_operand.vmem [shape: f32[8,1], index: 1, kind: input, shape index: {}]
  %s2 = inlined_call_operand.vmem [shape: f32[8,1], index: 2, kind: input, shape index: {}]
  %s3 = inlined_call_operand.vmem [shape: f32[2,8,512], index: 3, kind: output, shape index: {}]
  %s4 = sld [smem:[#allocation0]]
  $region45: #{basic_block_forward.3} parent=0
    _
  %s6 = ssub.s32 1, %s4
  %s7 = scalar_select 0, %s6, %s4
  loop: start=0, step=1, limit=4
  $region2: #{basic_block_forward.3} parent=0 // loop_pre_header
    _
  $region3: #{basic_block_forward.3} parent=0 // loop_header
    %s9 = sphi 0, %s13
    %p10 = scmp.ge.s32.totalorder %s9, 4
    %s16 = sphi 0, %s28
    %s17 = sphi 0, %s24
    %s18 = sphi 0, %s16
    %s19 = sphi 0, %s17
    %s20 = sphi 0, %s18
    %s21 = sphi 0, %s19
    %s33 = sphi 0, %s35
    %s36 = sphi 0, %s33
    %s37 = sphi 0, %s36
    %s53 = sphi 0, %s37
    %s57 = sphi 0, %s57
    %s59 = sphi 0, %s57
    %s60 = sphi 0, %s59
    %s74 = sphi 0, %s60
    %s78 = sphi 0, %s78
    %s80 = sphi 0, %s78
    %s81 = sphi 0, %s80
    %s95 = sphi 0, %s81
    %s103 = sphi 0, %s105
    %s106 = sphi 0, %s103
    %s107 = sphi 0, %s106
    %s123 = sphi 0, %s107
  $region4: #{basic_block_forward.3} parent=0 // loop_header_branch
    %12 = sbr.rel (%p10) target = $region8
  $region5: #{basic_block_forward.3} parent=0 // loop_body
    %s14 = ssub.s32 %s9, 1
    %s15 = ssub.s32 %s9, 2
    %s22 = sadd.s32 1, %s17
    %p23 = scmp.ge.s32.totalorder %s22, 1
    %s24 = scalar_select %p23, 0, %s22
    %s25 = sadd.s32 1, %s16
    %s26 = scalar_select %p23, %s25, %s16
    %p27 = scmp.ge.s32.totalorder %s26, 2
    %s28 = scalar_select %p27, 0, %s26
    %s29 = ssub.s32 %s16, %s28
    %s30 = ssub.s32 %s17, %s24
    %s31 = sor.u32 %s29, %s30
    %p32 = scmp.eq.s32.totalorder %s31, 0
    %s34 = sadd.s32 %s33, 1
    %s35 = scalar_select %p32, %s33, %s34
    %p38 = pneg %p32
    %p39 = scmp.eq.s32.totalorder %s9, 1
    %p40 = por %p38, %p39
    %p41 = scmp.ne.s32.totalorder %s33, %s36
    %p42 = scmp.eq.s32.totalorder %s9, 0
    %p43 = por %p41, %p42
    %p44 = scmp.ne.s32.totalorder %s33, %s36
    %p45 = scmp.eq.s32.totalorder %s14, 1
    %p46 = por %p44, %p45
    %p47 = scmp.ne.s32.totalorder %s36, %s37
    %p48 = scmp.eq.s32.totalorder %s14, 0
    %p49 = por %p47, %p48
    %p50 = scmp.ne.s32.totalorder %s36, %s37
    %p51 = scmp.eq.s32.totalorder %s15, 1
    %p52 = por %p50, %p51
    %p54 = scmp.ne.s32.totalorder %s37, %s53
    %p55 = scmp.eq.s32.totalorder %s15, 0
    %p56 = por %p54, %p55
    %s58 = sadd.s32 %s57, 1
    %p61 = scmp.eq.s32.totalorder %s9, 1
    %p62 = scmp.ne.s32.totalorder %s57, %s59
    %p63 = scmp.eq.s32.totalorder %s9, 0
    %p64 = por %p62, %p63
    %p65 = scmp.ne.s32.totalorder %s57, %s59
    %p66 = scmp.eq.s32.totalorder %s14, 1
    %p67 = por %p65, %p66
    %p68 = scmp.ne.s32.totalorder %s59, %s60
    %p69 = scmp.eq.s32.totalorder %s14, 0
    %p70 = por %p68, %p69
    %p71 = scmp.ne.s32.totalorder %s59, %s60
    %p72 = scmp.eq.s32.totalorder %s15, 1
    %p73 = por %p71, %p72
    %p75 = scmp.ne.s32.totalorder %s60, %s74
    %p76 = scmp.eq.s32.totalorder %s15, 0
    %p77 = por %p75, %p76
    %s79 = sadd.s32 %s78, 1
    %p82 = scmp.eq.s32.totalorder %s9, 1
    %p83 = scmp.ne.s32.totalorder %s78, %s80
    %p84 = scmp.eq.s32.totalorder %s9, 0
    %p85 = por %p83, %p84
    %p86 = scmp.ne.s32.totalorder %s78, %s80
    %p87 = scmp.eq.s32.totalorder %s14, 1
    %p88 = por %p86, %p87
    %p89 = scmp.ne.s32.totalorder %s80, %s81
    %p90 = scmp.eq.s32.totalorder %s14, 0
    %p91 = por %p89, %p90
    %p92 = scmp.ne.s32.totalorder %s80, %s81
    %p93 = scmp.eq.s32.totalorder %s15, 1
    %p94 = por %p92, %p93
    %p96 = scmp.ne.s32.totalorder %s81, %s95
    %p97 = scmp.eq.s32.totalorder %s15, 0
    %p98 = por %p96, %p97
    %s99 = ssub.s32 %s16, %s28
    %s100 = ssub.s32 %s17, %s24
    %s101 = sor.u32 %s99, %s100
    %p102 = scmp.eq.s32.totalorder %s101, 0
    %s104 = sadd.s32 %s103, 1
    %s105 = scalar_select %p102, %s103, %s104
    %p108 = pneg %p102
    %p109 = scmp.eq.s32.totalorder %s9, 1
    %p110 = por %p108, %p109
    %p111 = scmp.ne.s32.totalorder %s103, %s106
    %p112 = scmp.eq.s32.totalorder %s9, 0
    %p113 = por %p111, %p112
    %p114 = scmp.ne.s32.totalorder %s103, %s106
    %p115 = scmp.eq.s32.totalorder %s14, 1
    %p116 = por %p114, %p115
    %p117 = scmp.ne.s32.totalorder %s106, %s107
    %p118 = scmp.eq.s32.totalorder %s14, 0
    %p119 = por %p117, %p118
    %p120 = scmp.ne.s32.totalorder %s106, %s107
    %p121 = scmp.eq.s32.totalorder %s15, 1
    %p122 = por %p120, %p121
    %p124 = scmp.ne.s32.totalorder %s107, %s123
    %p125 = scmp.eq.s32.totalorder %s15, 0
    %p126 = por %p124, %p125
    %p127 = scmp.le.s32.totalorder 1, %s9
    %p128 = scmp.lt.s32.totalorder %s9, 3
    %p129 = pnand %p127, %p128
    %p130 = pneg %p129
    // Predicated region
    $region9: #{basic_block_forward.3} parent=5 // pred_check
      _
    $region10: #{basic_block_forward.3} parent=5 // pred_check_branch
      %132 = sbr.rel (%p129) target = $region12
    $region11: #{basic_block_forward.3} parent=5 // pred_region
      %s133 = ssub.s32 %s9, 1
      // Predicated region
      $region13: #{basic_block_forward.3} parent=11 // pred_check
        %p134 = pneg %p70
      $region14: #{basic_block_forward.3} parent=11 // pred_check_branch
        %136 = sbr.rel (%p134) target = $region16
      $region15: #{basic_block_forward.3} parent=11 // pred_region
        _
      $region16: #{basic_block_forward.3} parent=11 // pred_fallthru
        _
      // Predicated region
      $region17: #{basic_block_forward.3} parent=11 // pred_check
        %p137 = pneg %p91
      $region18: #{basic_block_forward.3} parent=11 // pred_check_branch
        %139 = sbr.rel (%p137) target = $region20
      $region19: #{basic_block_forward.3} parent=11 // pred_region
        _
      $region20: #{basic_block_forward.3} parent=11 // pred_fallthru
        _
    $region12: #{basic_block_forward.3} parent=5 // pred_fallthru
      _
    %p140 = scmp.lt.s32.totalorder %s9, 2
    // Predicated region
    $region21: #{basic_block_forward.3} parent=5 // pred_check
      %p141 = pneg %p140
    $region22: #{basic_block_forward.3} parent=5 // pred_check_branch
      %143 = sbr.rel (%p141) target = $region24
    $region23: #{basic_block_forward.3} parent=5 // pred_region
      // Predicated region
      $region25: #{basic_block_forward.3} parent=23 // pred_check
        %p144 = pneg %p43
      $region26: #{basic_block_forward.3} parent=23 // pred_check_branch
        %146 = sbr.rel (%p144) target = $region28
      $region27: #{basic_block_forward.3} parent=23 // pred_region
        %s147 = smul.u32 4, %s17
        %p148 = scmp.lt.s32.totalorder %s16, 1
        %s149 = scalar_select %p148, %s16, 1
        %p150 = scmp.lt.s32.totalorder %s147, 3
        %s151 = scalar_select %p150, %s147, 3
        %s152 = smul.addr %s149, 4
        %s153 = sadd.s32 %s151, %s152
        %s154 = smul.addr %s153, 8
        %s155 = scalar_lea.vmem %s0, %s154
        %s156 = smul.u32 4, %s17
      $region28: #{basic_block_forward.3} parent=23 // pred_fallthru
        _
    $region24: #{basic_block_forward.3} parent=5 // pred_fallthru
      _
    %p157 = scmp.le.s32.totalorder 1, %s9
    %p158 = scmp.lt.s32.totalorder %s9, 3
    %p159 = pnand %p157, %p158
    %p160 = pneg %p159
    // Predicated region
    $region29: #{basic_block_forward.3} parent=5 // pred_check
      _
    $region30: #{basic_block_forward.3} parent=5 // pred_check_branch
      %162 = sbr.rel (%p159) target = $region32
    $region31: #{basic_block_forward.3} parent=5 // pred_region
      %s163 = ssub.s32 %s9, 1
      %s164 = smul.u32 4, %s19
      %p165 = scmp.lt.s32.totalorder %s18, 1
      %s166 = scalar_select %p165, %s18, 1
      %p167 = scmp.lt.s32.totalorder %s164, 3
      %s168 = scalar_select %p167, %s164, 3
      %s169 = smul.addr %s166, 4
      %s170 = sadd.s32 %s168, %s169
      %s171 = smul.addr %s170, 8
      %s172 = scalar_lea.vmem %s0, %s171
      %p173 = pneg %p49
      %p174 = pneg %p46
      %p175 = pneg %p70
      %p176 = pneg %p67
      %p177 = pneg %p91
      %p178 = pneg %p88
      %p179 = pneg %p119
      %p180 = pneg %p116
      %s181 = smul.u32 4, %s19
      %p182 = scmp.lt.s32.totalorder %s18, 1
      %s183 = scalar_select %p182, %s18, 1
      %p184 = scmp.lt.s32.totalorder %s181, 3
      %s185 = scalar_select %p184, %s181, 3
      %s186 = smul.addr %s183, 4
      %s187 = sadd.s32 %s185, %s186
      %s188 = smul.addr %s187, 8
      %s189 = scalar_lea.vmem %s3, %s188
      %s190 = smul.u32 4, %s19
      %p191 = scmp.lt.s32.totalorder %s18, 1
      %s192 = scalar_select %p191, %s18, 1
      %p193 = scmp.lt.s32.totalorder %s190, 3
      %s194 = scalar_select %p193, %s190, 3
      %s195 = smul.addr %s192, 4
      %s196 = sadd.s32 %s194, %s195
      %s197 = smul.addr %s196, 8
      %s198 = scalar_lea.vmem %s0, %s197
      %s199 = smul.u32 4, %s19
      %s200 = smul.u32 4, %s19
      %p201 = scmp.lt.s32.totalorder %s18, 1
      %s202 = scalar_select %p201, %s18, 1
      %p203 = scmp.lt.s32.totalorder %s200, 3
      %s204 = scalar_select %p203, %s200, 3
      %s205 = smul.addr %s202, 4
      %s206 = sadd.s32 %s204, %s205
      %s207 = smul.addr %s206, 8
      %s208 = scalar_lea.vmem %s3, %s207
      %s209 = smul.u32 4, %s19
      %v210 = vld [vmem:[%s198] sm:$0xff]
      %v211 = vld [vmem:[%s198 + $0x8] sm:$0xff]
      %v212 = vld [vmem:[%s198 + $0x10] sm:$0xff]
      %v213 = vld [vmem:[%s198 + $0x18] sm:$0xff]
      %v214 = vld [vmem:[%s1] sm:$0xff]
      %216 = vset.pattern.permute.xlu0 0
      %217 = vperm.xlu0 %216, %v214
      %v218 = vpop.permute.xlu0 %217
      %v220 = vmul.f32 %v210, %v218
      %v221 = vmul.f32 %v211, %v218
      %v222 = vmul.f32 %v212, %v218
      %v223 = vmul.f32 %v213, %v218
      %v224 = vld [vmem:[%s2] sm:$0xff]
      %226 = vset.pattern.permute.xlu0 0
      %227 = vperm.xlu0 %226, %v224
      %v228 = vpop.permute.xlu0 %227
      %v230 = vadd.f32 %v220, %v228
      %v231 = vadd.f32 %v221, %v228
      %v232 = vadd.f32 %v222, %v228
      %v233 = vadd.f32 %v223, %v228
      %v234 = vsub.f32 0.0, %v230
      %v235 = vsub.f32 0.0, %v231
      %v236 = vsub.f32 0.0, %v232
      %v237 = vsub.f32 0.0, %v233
      %v238 = vmul.f32 %v234, 1.442695
      %v239 = vpow.pop %v238
      %v240 = vmul.f32 %v235, 1.442695
      %v241 = vpow.pop %v240
      %v242 = vmul.f32 %v236, 1.442695
      %v243 = vpow.pop %v242
      %v244 = vmul.f32 %v237, 1.442695
      %v245 = vpow.pop %v244
      %v246 = vadd.f32 %v239, 1.0
      %v247 = vadd.f32 %v241, 1.0
      %v248 = vadd.f32 %v243, 1.0
      %v249 = vadd.f32 %v245, 1.0
      %v250 = vrcp.pop %v246
      %v251 = vrcp.pop %v247
      %v252 = vrcp.pop %v248
      %v253 = vrcp.pop %v249
      %v254 = vmul.f32 %v230, %v250
      %v255 = vmul.f32 %v231, %v251
      %v256 = vmul.f32 %v232, %v252
      %v257 = vmul.f32 %v233, %v253
      %258 = vst [vmem:[%s208] sm:$0xff] %v254
      %259 = vst [vmem:[%s208 + $0x8] sm:$0xff] %v255
      %260 = vst [vmem:[%s208 + $0x10] sm:$0xff] %v256
      %261 = vst [vmem:[%s208 + $0x18] sm:$0xff] %v257
      %s262 = smul.u32 4, %s19
      %p263 = scmp.lt.s32.totalorder %s18, 1
      %s264 = scalar_select %p263, %s18, 1
      %p265 = scmp.lt.s32.totalorder %s262, 3
      %s266 = scalar_select %p265, %s262, 3
      %s267 = smul.addr %s264, 4
      %s268 = sadd.s32 %s266, %s267
      %s269 = smul.addr %s268, 8
      %s270 = scalar_lea.vmem %s3, %s269
      // Predicated region
      $region33: #{basic_block_forward.3} parent=31 // pred_check
        %p271 = pneg %p116
      $region34: #{basic_block_forward.3} parent=31 // pred_check_branch
        %273 = sbr.rel (%p271) target = $region36
      $region35: #{basic_block_forward.3} parent=31 // pred_region
        %s274 = smul.u32 4, %s19
      $region36: #{basic_block_forward.3} parent=31 // pred_fallthru
        _
    $region32: #{basic_block_forward.3} parent=5 // pred_fallthru
      _
    %p275 = scmp.le.s32.totalorder 2, %s9
    // Predicated region
    $region37: #{basic_block_forward.3} parent=5 // pred_check
      %p276 = pneg %p275
    $region38: #{basic_block_forward.3} parent=5 // pred_check_branch
      %278 = sbr.rel (%p276) target = $region40
    $region39: #{basic_block_forward.3} parent=5 // pred_region
      %s279 = ssub.s32 %s9, 2
      // Predicated region
      $region41: #{basic_block_forward.3} parent=39 // pred_check
        %p280 = pneg %p122
      $region42: #{basic_block_forward.3} parent=39 // pred_check_branch
        %282 = sbr.rel (%p280) target = $region44
      $region43: #{basic_block_forward.3} parent=39 // pred_region
        %s283 = smul.u32 4, %s21
        %p284 = scmp.lt.s32.totalorder %s20, 1
        %s285 = scalar_select %p284, %s20, 1
        %p286 = scmp.lt.s32.totalorder %s283, 3
        %s287 = scalar_select %p286, %s283, 3
        %s288 = smul.addr %s285, 4
        %s289 = sadd.s32 %s287, %s288
        %s290 = smul.addr %s289, 8
        %s291 = scalar_lea.vmem %s3, %s290
      $region44: #{basic_block_forward.3} parent=39 // pred_fallthru
        _
    $region40: #{basic_block_forward.3} parent=5 // pred_fallthru
      _
  $region6: #{basic_block_forward.3} parent=0 // loop_footer
    %s13 = sadd.s32 1, %s9
  $region7: #{basic_block_forward.3} parent=0 // loop_footer_branch
    %8 = sbr.rel target = $region3
  $region8: #{basic_block_forward.3} parent=0 // loop_exit
    _

</llo_original>
